<compile_context>
chip_gen: v6e
topology: v6e:2x2x1
jax: 0.10.0
libtpu: 0.0.40
codegen_flags: <defaults>
</compile_context>

<pallas_src>
import functools

import jax
import jax.numpy as jnp
from jax.experimental import pallas as pl
from jax.experimental.pallas import tpu as pltpu


def _round_up(n, m):
    return ((n + m - 1) // m) * m


def rnn_fc_kernel(x_ref, whh_ref, ih_ref, fc_ref, out_ref, *,
                  seq_len, batch_p, in_size, out_size):
    """Vanilla RNN (tanh) over the full sequence + Linear on the last hidden state.

    x_ref   : (S*Bp, I)        time-major flattened input (row = t*Bp + b), batch zero-padded
    whh_ref : (Hp, Hp)         W_hh^T, zero-padded to the 128-lane width
    ih_ref  : (>=I+1, Hp)      rows 0..I-1 = W_ih^T, row I = b_ih + b_hh (zero-padded)
    fc_ref  : out_size == 1 -> (8, Hp): row 0 = w_fc row, row 1 = b_fc broadcast
              out_size  > 1 -> (>=Hp+1, Op): rows 0..Hp-1 = W_fc^T, row Hp = b_fc
    out_ref : (Bp, Op)         lane-dense output block (wrapper slices [:B, :O])
    """
    hp = whh_ref.shape[0]

    x = x_ref[...]                                     # (S*Bp, I)
    bias = ih_ref[in_size:in_size + 1, :]              # (1, Hp) fused b_ih + b_hh

    if in_size == 1:
        # K=1 projection on the VPU: lane-broadcast multiply-add, no MXU pass.
        xproj = x * ih_ref[0:1, :] + bias              # (S*Bp, Hp)
    else:
        xproj = (jnp.dot(x, ih_ref[0:in_size, :],
                         preferred_element_type=jnp.float32) + bias)

    # Hoist the recurrence weight into vregs only while it fits comfortably (Hp==128 -> 16 vregs).
    whh = whh_ref[...] if hp <= 128 else None

    # Recurrence: h stays register-resident; loop statically unrolled (S small & static).
    # For long sequences xproj should be time-chunked / streamed instead of held as one value
    # (matters on v7x with 64 MiB VMEM); unnecessary at these sizes.
    h = jnp.zeros((batch_p, hp), jnp.float32)
    for t in range(seq_len):
        xp_t = xproj[t * batch_p:(t + 1) * batch_p, :]            # static slice, (Bp, Hp)
        rhs = whh if whh is not None else whh_ref[...]
        h = jnp.tanh(xp_t + jnp.dot(h, rhs, preferred_element_type=jnp.float32))

    # fc(out[:, -1, :])
    if out_size == 1:
        # N=1 matmul replaced by VPU multiply + XLU lane reduction.
        wfc_row = fc_ref[0:1, :]                                  # (1, Hp)
        res = jnp.sum(h * wfc_row, axis=-1, keepdims=True)        # (Bp, 1)
        res = res + fc_ref[1:2, 0:1]                              # + b_fc
        out_ref[...] = jnp.broadcast_to(res, out_ref.shape)       # lane-dense unmasked store
    else:
        wfc = fc_ref[0:hp, :]                                     # (Hp, Op)
        bfc = fc_ref[hp:hp + 1, :]                                # (1, Op)
        out_ref[...] = (jnp.dot(h, wfc, preferred_element_type=jnp.float32) + bfc)


def rnn_model_forward(x, params):
    """x: (B, S, I) float32 -> (B, O) float32, matching RNNModel.forward (zero h0)."""
    B, S, I = x.shape
    w_ih, w_hh = params["w_ih"], params["w_hh"]      # torch layouts (H, I), (H, H)
    b_ih, b_hh = params["b_ih"], params["b_hh"]      # (H,), (H,)
    w_fc, b_fc = params["w_fc"], params["b_fc"]      # (O, H), (O,)
    H = w_hh.shape[0]
    O = w_fc.shape[0]

    # Pad hidden width to exactly one 128-lane tile (do NOT over-pad to 256 for the wide MXUs);
    # zero padding is inert: padded hidden lanes stay at tanh(0)=0, padded fc lanes contribute 0.
    Hp = _round_up(max(H, 128), 128)
    # Pad batch to 8 sublanes; padded rows never mix with real rows (matmuls mix lanes only).
    Bp = _round_up(max(B, 8), 8)

    f32 = jnp.float32
    whh_p = jnp.zeros((Hp, Hp), f32).at[:H, :H].set(w_hh.T.astype(f32))

    # Packed input-side slab: W_ih^T rows + fused bias row (one DMA instead of two/three).
    ih_rows = _round_up(I + 1, 8)
    ih_slab = jnp.zeros((ih_rows, Hp), f32)
    ih_slab = ih_slab.at[:I, :H].set(w_ih.T.astype(f32))
    ih_slab = ih_slab.at[I, :H].set((b_ih + b_hh).astype(f32))

    # Packed output-side slab.
    if O == 1:
        Op = 128                                   # lane-dense output block
        fc_slab = jnp.zeros((8, Hp), f32)
        fc_slab = fc_slab.at[0, :H].set(w_fc[0].astype(f32))
        fc_slab = fc_slab.at[1, :].set(b_fc.astype(f32)[0])
    else:
        Op = _round_up(O, 128)
        fc_slab = jnp.zeros((_round_up(Hp + 1, 8), Op), f32)
        fc_slab = fc_slab.at[:H, :O].set(w_fc.T.astype(f32))
        fc_slab = fc_slab.at[Hp, :O].set(b_fc.astype(f32))

    # Time-major, batch-padded, flattened rows (row = t*Bp + b).
    x_tm = jnp.transpose(x, (1, 0, 2)).astype(f32)                 # (S, B, I)
    x_tm = jnp.pad(x_tm, ((0, 0), (0, Bp - B), (0, 0)))            # (S, Bp, I)
    x_tm = x_tm.reshape(S * Bp, I)

    vmem = pl.BlockSpec(memory_space=pltpu.MemorySpace.VMEM)
    kernel = functools.partial(rnn_fc_kernel, seq_len=S, batch_p=Bp,
                               in_size=I, out_size=O)
    out_p = pl.pallas_call(
        kernel,
        out_shape=jax.ShapeDtypeStruct((Bp, Op), f32),
        in_specs=[vmem] * 4,
        out_specs=vmem,
    )(x_tm, whh_p, ih_slab, fc_slab)
    return out_p[:B, :O]


def init_params(key, input_size=1, hidden_size=64, output_size=1):
    """Deterministic init mimicking PyTorch's U(-1/sqrt(H), 1/sqrt(H)), torch weight layouts."""
    k = jax.random.split(key, 6)
    bound = 1.0 / jnp.sqrt(hidden_size)
    u = lambda kk, shape: jax.random.uniform(kk, shape, jnp.float32, -bound, bound)
    return {
        "w_ih": u(k[0], (hidden_size, input_size)),
        "w_hh": u(k[1], (hidden_size, hidden_size)),
        "b_ih": u(k[2], (hidden_size,)),
        "b_hh": u(k[3], (hidden_size,)),
        "w_fc": u(k[4], (output_size, hidden_size)),
        "b_fc": u(k[5], (output_size,)),
    }


def reference_forward(x, params):
    """Pure-JAX reference implementing the same PyTorch semantics (f32, zero h0)."""
    B, S, _ = x.shape
    H = params["w_hh"].shape[0]
    h = jnp.zeros((B, H), jnp.float32)
    for t in range(S):
        h = jnp.tanh(x[:, t, :] @ params["w_ih"].T + params["b_ih"]
                     + h @ params["w_hh"].T + params["b_hh"])
    return h @ params["w_fc"].T + params["b_fc"]


if __name__ == "__main__":
    key = jax.random.PRNGKey(0)
    k_x, k_p = jax.random.split(key)

    batch, seq, input_size, hidden_size, output_size = 4, 8, 1, 64, 1
    x = jax.random.normal(k_x, (batch, seq, input_size), jnp.float32)
    params = init_params(k_p, input_size, hidden_size, output_size)

    out = rnn_model_forward(x, params)
    out = jax.block_until_ready(out)

    ref = reference_forward(x, params)
    assert out.shape == (batch, output_size)
    assert jnp.allclose(out, ref, atol=1e-5, rtol=1e-5), (out, ref)

    print("KERNEL_OK")
</pallas_src>

<mosaic_0001>
module attributes {stable_mosaic.version = 11 : i64} {
  func.func @rnn_fc_kernel(%arg0: memref<64x1xf32, #tpu.memory_space<vmem>>, %arg1: memref<128x128xf32, #tpu.memory_space<vmem>>, %arg2: memref<8x128xf32, #tpu.memory_space<vmem>>, %arg3: memref<8x128xf32, #tpu.memory_space<vmem>>, %arg4: memref<8x128xf32, #tpu.memory_space<vmem>>) attributes {dimension_semantics = [], scalar_prefetch = 0 : i64, scratch_operands = 0 : i64, tpu.core_type = #tpu.core_type<tc>} {
    %c0 = arith.constant 0 : index
    %c0_0 = arith.constant 0 : index
    %0 = vector.load %arg0[%c0, %c0_0] : memref<64x1xf32, #tpu.memory_space<vmem>>, vector<64x1xf32>
    %c1 = arith.constant 1 : index
    %c0_1 = arith.constant 0 : index
    %1 = vector.load %arg2[%c1, %c0_1] : memref<8x128xf32, #tpu.memory_space<vmem>>, vector<1x128xf32>
    %c0_2 = arith.constant 0 : index
    %c0_3 = arith.constant 0 : index
    %2 = vector.load %arg2[%c0_2, %c0_3] : memref<8x128xf32, #tpu.memory_space<vmem>>, vector<1x128xf32>
    %3 = vector.broadcast %0 : vector<64x1xf32> to vector<64x128xf32>
    %4 = vector.broadcast %2 : vector<1x128xf32> to vector<64x128xf32>
    %5 = arith.mulf %3, %4 : vector<64x128xf32>
    %6 = vector.broadcast %1 : vector<1x128xf32> to vector<64x128xf32>
    %7 = arith.addf %5, %6 : vector<64x128xf32>
    %c0_4 = arith.constant 0 : index
    %c0_5 = arith.constant 0 : index
    %8 = vector.load %arg1[%c0_4, %c0_5] : memref<128x128xf32, #tpu.memory_space<vmem>>, vector<128x128xf32>
    %cst = arith.constant 0.000000e+00 : f32
    %9 = vector.broadcast %cst : f32 to vector<8x128xf32>
    %10 = vector.extract_strided_slice %7 {offsets = [0, 0], sizes = [8, 128], strides = [1, 1]} : vector<64x128xf32> to vector<8x128xf32>
    %cst_6 = arith.constant dense<0.000000e+00> : vector<8x128xf32>
    %11 = tpu.matmul %9, %8, %cst_6 {dimension_numbers = #tpu.dot_dimension_numbers<[1], [0], [0], [1], [0, 0, 1, 1], [], []>} : vector<8x128xf32>, vector<128x128xf32>, vector<8x128xf32> -> vector<8x128xf32>
    %12 = arith.addf %10, %11 : vector<8x128xf32>
    %13 = math.tanh %12 : vector<8x128xf32>
    %14 = vector.extract_strided_slice %7 {offsets = [8, 0], sizes = [8, 128], strides = [1, 1]} : vector<64x128xf32> to vector<8x128xf32>
    %cst_7 = arith.constant dense<0.000000e+00> : vector<8x128xf32>
    %15 = tpu.matmul %13, %8, %cst_7 {dimension_numbers = #tpu.dot_dimension_numbers<[1], [0], [0], [1], [0, 0, 1, 1], [], []>} : vector<8x128xf32>, vector<128x128xf32>, vector<8x128xf32> -> vector<8x128xf32>
    %16 = arith.addf %14, %15 : vector<8x128xf32>
    %17 = math.tanh %16 : vector<8x128xf32>
    %18 = vector.extract_strided_slice %7 {offsets = [16, 0], sizes = [8, 128], strides = [1, 1]} : vector<64x128xf32> to vector<8x128xf32>
    %cst_8 = arith.constant dense<0.000000e+00> : vector<8x128xf32>
    %19 = tpu.matmul %17, %8, %cst_8 {dimension_numbers = #tpu.dot_dimension_numbers<[1], [0], [0], [1], [0, 0, 1, 1], [], []>} : vector<8x128xf32>, vector<128x128xf32>, vector<8x128xf32> -> vector<8x128xf32>
    %20 = arith.addf %18, %19 : vector<8x128xf32>
    %21 = math.tanh %20 : vector<8x128xf32>
    %22 = vector.extract_strided_slice %7 {offsets = [24, 0], sizes = [8, 128], strides = [1, 1]} : vector<64x128xf32> to vector<8x128xf32>
    %cst_9 = arith.constant dense<0.000000e+00> : vector<8x128xf32>
    %23 = tpu.matmul %21, %8, %cst_9 {dimension_numbers = #tpu.dot_dimension_numbers<[1], [0], [0], [1], [0, 0, 1, 1], [], []>} : vector<8x128xf32>, vector<128x128xf32>, vector<8x128xf32> -> vector<8x128xf32>
    %24 = arith.addf %22, %23 : vector<8x128xf32>
    %25 = math.tanh %24 : vector<8x128xf32>
    %26 = vector.extract_strided_slice %7 {offsets = [32, 0], sizes = [8, 128], strides = [1, 1]} : vector<64x128xf32> to vector<8x128xf32>
    %cst_10 = arith.constant dense<0.000000e+00> : vector<8x128xf32>
    %27 = tpu.matmul %25, %8, %cst_10 {dimension_numbers = #tpu.dot_dimension_numbers<[1], [0], [0], [1], [0, 0, 1, 1], [], []>} : vector<8x128xf32>, vector<128x128xf32>, vector<8x128xf32> -> vector<8x128xf32>
    %28 = arith.addf %26, %27 : vector<8x128xf32>
    %29 = math.tanh %28 : vector<8x128xf32>
    %30 = vector.extract_strided_slice %7 {offsets = [40, 0], sizes = [8, 128], strides = [1, 1]} : vector<64x128xf32> to vector<8x128xf32>
    %cst_11 = arith.constant dense<0.000000e+00> : vector<8x128xf32>
    %31 = tpu.matmul %29, %8, %cst_11 {dimension_numbers = #tpu.dot_dimension_numbers<[1], [0], [0], [1], [0, 0, 1, 1], [], []>} : vector<8x128xf32>, vector<128x128xf32>, vector<8x128xf32> -> vector<8x128xf32>
    %32 = arith.addf %30, %31 : vector<8x128xf32>
    %33 = math.tanh %32 : vector<8x128xf32>
    %34 = vector.extract_strided_slice %7 {offsets = [48, 0], sizes = [8, 128], strides = [1, 1]} : vector<64x128xf32> to vector<8x128xf32>
    %cst_12 = arith.constant dense<0.000000e+00> : vector<8x128xf32>
    %35 = tpu.matmul %33, %8, %cst_12 {dimension_numbers = #tpu.dot_dimension_numbers<[1], [0], [0], [1], [0, 0, 1, 1], [], []>} : vector<8x128xf32>, vector<128x128xf32>, vector<8x128xf32> -> vector<8x128xf32>
    %36 = arith.addf %34, %35 : vector<8x128xf32>
    %37 = math.tanh %36 : vector<8x128xf32>
    %38 = vector.extract_strided_slice %7 {offsets = [56, 0], sizes = [8, 128], strides = [1, 1]} : vector<64x128xf32> to vector<8x128xf32>
    %cst_13 = arith.constant dense<0.000000e+00> : vector<8x128xf32>
    %39 = tpu.matmul %37, %8, %cst_13 {dimension_numbers = #tpu.dot_dimension_numbers<[1], [0], [0], [1], [0, 0, 1, 1], [], []>} : vector<8x128xf32>, vector<128x128xf32>, vector<8x128xf32> -> vector<8x128xf32>
    %40 = arith.addf %38, %39 : vector<8x128xf32>
    %41 = math.tanh %40 : vector<8x128xf32>
    %c0_14 = arith.constant 0 : index
    %c0_15 = arith.constant 0 : index
    %42 = vector.load %arg3[%c0_14, %c0_15] : memref<8x128xf32, #tpu.memory_space<vmem>>, vector<1x128xf32>
    %43 = vector.broadcast %42 : vector<1x128xf32> to vector<8x128xf32>
    %44 = arith.mulf %41, %43 : vector<8x128xf32>
    %cst_16 = arith.constant dense<0.000000e+00> : vector<8xf32>
    %45 = vector.multi_reduction <add>, %44, %cst_16 [1] : vector<8x128xf32> to vector<8xf32>
    %46 = vector.shape_cast %45 : vector<8xf32> to vector<8x1xf32>
    %c1_17 = arith.constant 1 : index
    %c0_18 = arith.constant 0 : index
    %47 = vector.load %arg3[%c1_17, %c0_18] : memref<8x128xf32, #tpu.memory_space<vmem>>, vector<1x1xf32>
    %48 = vector.broadcast %47 : vector<1x1xf32> to vector<8x1xf32>
    %49 = arith.addf %46, %48 : vector<8x1xf32>
    %50 = vector.shape_cast %49 : vector<8x1xf32> to vector<8x1xf32>
    %51 = vector.broadcast %50 : vector<8x1xf32> to vector<8x128xf32>
    %c0_19 = arith.constant 0 : index
    %c0_20 = arith.constant 0 : index
    %52 = vector.load %arg4[%c0_19, %c0_20] : memref<8x128xf32, #tpu.memory_space<vmem>>, vector<8x128xf32>
    tpu.vector_store %arg4[%c0_19, %c0_20], %51 {strides = array<i32>} : memref<8x128xf32, #tpu.memory_space<vmem>>, vector<8x128xf32>,
    return
  }
}

</mosaic_0001>

<llo_original>
// kernel: tpu_custom_call.1
$region0: #{tpu_custom_call.1}
  #allocation0 [shape = 'u32[]', space=smem, size = 0x4, offset = 0x4, fixed_abs, tag = 'smem constant byte address 0x4 - core index']
  #allocation1 [shape = 'u32[144,128]{1,0:T(1,128)}', space=vmem, size = 0x12000, scoped, tag = 'internal scratch']
  %s0 = inlined_call_operand.vmem [shape: f32[64,1], index: 0, kind: input, shape index: {}]
  %s1 = inlined_call_operand.hbm [shape: f32[128,128], index: 1, kind: input, shape index: {}]
  %s2 = inlined_call_operand.vmem [shape: f32[8,128], index: 2, kind: input, shape index: {}]
  %s3 = inlined_call_operand.vmem [shape: f32[8,128], index: 3, kind: input, shape index: {}]
  %s4 = inlined_call_operand.hbm [shape: f32[8,128], index: 4, kind: output, shape index: {}]
  %s5 = sld [smem:[#allocation0]]
  $region30: #{tpu_custom_call.1} parent=0
    _
  %s7 = ssub.s32 1, %s5
  %s8 = scalar_select 0, %s7, %s5
  $region1: #{tpu_custom_call.1} parent=0
    #allocation2 [shape = 'u8[65536]{0}', space=vmem, size = 0x10000, scoped, tag = 'input window, operand 1, single buffered']
    #allocation3 [shape = 's32[1]{0}', space=sflag, size = 0x4, scoped, tag = 'scoped memory for tpu_custom_call.1']
    #allocation4 [shape = 's32[1]{0}', space=sflag, size = 0x4, scoped, tag = 'scoped memory for tpu_custom_call.1']
    #allocation5 [shape = 'u8[4096]{0}', space=vmem, size = 0x1000, scoped, tag = 'output window, operand 0, single buffered']
    %9 = vsyncpa [#allocation3], 0
    %10 = vsyncpa [#allocation4], 0
    // Predicated region
    $region2: #{tpu_custom_call.1} parent=1 // pred_check
      _
    $region3: #{tpu_custom_call.1} parent=1 // pred_check_branch
      %12 = sbr.rel (0) target = $region5
    $region4: #{tpu_custom_call.1} parent=1 // pred_region
      _
    $region5: #{tpu_custom_call.1} parent=1 // pred_fallthru
      _
    // Predicated region
    $region6: #{tpu_custom_call.1} parent=1 // pred_check
      _
    $region7: #{tpu_custom_call.1} parent=1 // pred_check_branch
      %14 = sbr.rel (0) target = $region9
    $region8: #{tpu_custom_call.1} parent=1 // pred_region
      %s16 = ssub.s32 2048, 2048
      %17 = vsyncadd [#allocation3], %s16
      %s18 = sshll.u32 [#allocation2], 4
      %s19 = int_to_ptr.vmem [resolvable:$true] %s18
      %24 = dma.hbm_to_vmem [thread:$0]  %s1, 2048, %s19, [#allocation3], 128, 128, 8
    $region9: #{tpu_custom_call.1} parent=1 // pred_fallthru
      _
    // Predicated region
    $region10: #{tpu_custom_call.1} parent=1 // pred_check
      _
    $region11: #{tpu_custom_call.1} parent=1 // pred_check_branch
      %26 = sbr.rel (0) target = $region13
    $region12: #{tpu_custom_call.1} parent=1 // pred_region
      _
    $region13: #{tpu_custom_call.1} parent=1 // pred_fallthru
      _
    // Predicated region
    $region14: #{tpu_custom_call.1} parent=1 // pred_check
      _
    $region15: #{tpu_custom_call.1} parent=1 // pred_check_branch
      %28 = sbr.rel (0) target = $region17
    $region16: #{tpu_custom_call.1} parent=1 // pred_region
      _
    $region17: #{tpu_custom_call.1} parent=1 // pred_fallthru
      _
    // Predicated region
    $region18: #{tpu_custom_call.1} parent=1 // pred_check
      _
    $region19: #{tpu_custom_call.1} parent=1 // pred_check_branch
      %30 = sbr.rel (0) target = $region21
    $region20: #{tpu_custom_call.1} parent=1 // pred_region
      %31 = dma.done [#allocation3], 2048
    $region21: #{tpu_custom_call.1} parent=1 // pred_fallthru
      _
    %v32 = vld [vmem:[%s0] sm:$0xff]
    %v33 = vld [vmem:[%s0 + $0x8] sm:$0xff]
    %v34 = vld [vmem:[%s0 + $0x10] sm:$0xff]
    %v35 = vld [vmem:[%s0 + $0x18] sm:$0xff]
    %v36 = vld [vmem:[%s0 + $0x20] sm:$0xff]
    %v37 = vld [vmem:[%s0 + $0x28] sm:$0xff]
    %v38 = vld [vmem:[%s0 + $0x30] sm:$0xff]
    %v39 = vld [vmem:[%s0 + $0x38] sm:$0xff]
    %v40 = vld [vmem:[%s2 + $0x1] sm:$0x1]
    %v41 = vld [vmem:[%s2] sm:$0x1]
    %43 = vset.pattern.permute.xlu0 0
    %44 = vperm.xlu0 %43, %v32
    %v45 = vpop.permute.xlu0 %44
    %48 = vset.pattern.permute.xlu0 0
    %49 = vperm.xlu0 %48, %v33
    %v50 = vpop.permute.xlu0 %49
    %53 = vset.pattern.permute.xlu0 0
    %54 = vperm.xlu0 %53, %v34
    %v55 = vpop.permute.xlu0 %54
    %58 = vset.pattern.permute.xlu0 0
    %59 = vperm.xlu0 %58, %v35
    %v60 = vpop.permute.xlu0 %59
    %63 = vset.pattern.permute.xlu0 0
    %64 = vperm.xlu0 %63, %v36
    %v65 = vpop.permute.xlu0 %64
    %68 = vset.pattern.permute.xlu0 0
    %69 = vperm.xlu0 %68, %v37
    %v70 = vpop.permute.xlu0 %69
    %73 = vset.pattern.permute.xlu0 0
    %74 = vperm.xlu0 %73, %v38
    %v75 = vpop.permute.xlu0 %74
    %78 = vset.pattern.permute.xlu0 0
    %79 = vperm.xlu0 %78, %v39
    %v80 = vpop.permute.xlu0 %79
    %v82 = vlaneseq
    %v83 = vshrl.u32 %v82, 7
    %v84 = vsub.s32 0, %v83
    %v85 = vrot.slane %v41, %v84
    %v86 = vmul.f32 %v45, %v85
    %v87 = vmul.f32 %v50, %v85
    %v88 = vmul.f32 %v55, %v85
    %v89 = vmul.f32 %v60, %v85
    %v90 = vmul.f32 %v65, %v85
    %v91 = vmul.f32 %v70, %v85
    %v92 = vmul.f32 %v75, %v85
    %v93 = vmul.f32 %v80, %v85
    %v94 = vlaneseq
    %v95 = vshrl.u32 %v94, 7
    %v96 = vsub.s32 0, %v95
    %v97 = vrot.slane %v40, %v96
    %v98 = vadd.f32 %v86, %v97
    %v99 = vadd.f32 %v87, %v97
    %v100 = vadd.f32 %v88, %v97
    %v101 = vadd.f32 %v89, %v97
    %v102 = vadd.f32 %v90, %v97
    %v103 = vadd.f32 %v91, %v97
    %v104 = vadd.f32 %v92, %v97
    %v105 = vadd.f32 %v93, %v97
    %v106 = vld [vmem:[#allocation2] sm:$0xff]
    %v107 = vld [vmem:[#allocation2 + $0x8] sm:$0xff]
    %v108 = vld [vmem:[#allocation2 + $0x10] sm:$0xff]
    %v109 = vld [vmem:[#allocation2 + $0x18] sm:$0xff]
    %v110 = vld [vmem:[#allocation2 + $0x20] sm:$0xff]
    %v111 = vld [vmem:[#allocation2 + $0x28] sm:$0xff]
    %v112 = vld [vmem:[#allocation2 + $0x30] sm:$0xff]
    %v113 = vld [vmem:[#allocation2 + $0x38] sm:$0xff]
    %v114 = vld [vmem:[#allocation2 + $0x40] sm:$0xff]
    %v115 = vld [vmem:[#allocation2 + $0x48] sm:$0xff]
    %v116 = vld [vmem:[#allocation2 + $0x50] sm:$0xff]
    %v117 = vld [vmem:[#allocation2 + $0x58] sm:$0xff]
    %v118 = vld [vmem:[#allocation2 + $0x60] sm:$0xff]
    %v119 = vld [vmem:[#allocation2 + $0x68] sm:$0xff]
    %v120 = vld [vmem:[#allocation2 + $0x70] sm:$0xff]
    %v121 = vld [vmem:[#allocation2 + $0x78] sm:$0xff]
    %122 = vmatprep.subr.mxu0 0.0
    %123 = vmatpush1.msra.mxu0 %v121
    %124 = vmatprep.subr.mxu0 0.0
    %125 = vmatpush1.msra.mxu0 %v120
    %126 = vmatprep.subr.mxu0 0.0
    %127 = vmatpush1.msra.mxu0 %v119
    %128 = vmatprep.subr.mxu0 0.0
    %129 = vmatpush1.msra.mxu0 %v118
    %130 = vmatprep.subr.mxu0 0.0
    %131 = vmatpush1.msra.mxu0 %v117
    %132 = vmatprep.subr.mxu0 0.0
    %133 = vmatpush1.msra.mxu0 %v116
    %134 = vmatprep.subr.mxu0 0.0
    %135 = vmatpush1.msra.mxu0 %v115
    %136 = vmatprep.subr.mxu0 0.0
    %137 = vmatpush1.msra.mxu0 %v114
    %138 = vmatprep.subr.mxu0 0.0
    %139 = vmatpush1.msra.mxu0 %v113
    %140 = vmatprep.subr.mxu0 0.0
    %141 = vmatpush1.msra.mxu0 %v112
    %142 = vmatprep.subr.mxu0 0.0
    %143 = vmatpush1.msra.mxu0 %v111
    %144 = vmatprep.subr.mxu0 0.0
    %145 = vmatpush1.msra.mxu0 %v110
    %146 = vmatprep.subr.mxu0 0.0
    %147 = vmatpush1.msra.mxu0 %v109
    %148 = vmatprep.subr.mxu0 0.0
    %149 = vmatpush1.msra.mxu0 %v108
    %150 = vmatprep.subr.mxu0 0.0
    %151 = vmatpush1.msra.mxu0 %v107
    %152 = vmatprep.subr.mxu0 0.0
    %153 = vmatpush1.msra.mxu0 %v106
    %154 = vmatprep.subr.mxu0 0.0
    %155 = vmatpush2.msra.mxu0 0.0
    %156 = vmatprep.subr.mxu0 0.0
    %157 = vmatpush2.msra.mxu0 0.0
    %158 = vmatprep.subr.mxu0 0.0
    %159 = vmatpush2.msra.mxu0 0.0
    %160 = vmatprep.subr.mxu0 0.0
    %161 = vmatpush2.msra.mxu0 0.0
    %162 = vmatprep.subr.mxu0 0.0
    %163 = vmatpush2.msra.mxu0 0.0
    %164 = vmatprep.subr.mxu0 0.0
    %165 = vmatpush2.msra.mxu0 0.0
    %166 = vmatprep.subr.mxu0 0.0
    %167 = vmatpush2.msra.mxu0 0.0
    %168 = vmatprep.subr.mxu0 0.0
    %169 = vmatpush2.msra.mxu0 0.0
    %170 = vmatprep.subr.mxu0 0.0
    %171 = vmatpush2.msra.mxu0 0.0
    %172 = vmatprep.subr.mxu0 0.0
    %173 = vmatpush2.msra.mxu0 0.0
    %174 = vmatprep.subr.mxu0 0.0
    %175 = vmatpush2.msra.mxu0 0.0
    %176 = vmatprep.subr.mxu0 0.0
    %177 = vmatpush2.msra.mxu0 0.0
    %178 = vmatprep.subr.mxu0 0.0
    %179 = vmatpush2.msra.mxu0 0.0
    %180 = vmatprep.subr.mxu0 0.0
    %181 = vmatpush2.msra.mxu0 0.0
    %182 = vmatprep.subr.mxu0 0.0
    %183 = vmatpush2.msra.mxu0 0.0
    %184 = vmatprep.subr.mxu0 0.0
    %185 = vmatpush2.msra.mxu0 0.0
    %186 = vmatprep.mubr.f32.mxu0 0.0
    %187 = vmatmul.mubr.f32.gmra.mxu0 0.0
    %v188 = vpop.f32.mrf.mxu0
    %v189 = vadd.f32 0.0, %v188
    %v190 = vpop.f32.mrf.mxu0
    %191 = vdwg.mxu0
    %v192 = vadd.f32 %v98, %v189
    %v193 = vtanh.pop %v192
    %194 = vmatprep.subr.mxu0 0.0
    %195 = vmatpush1.msra.mxu0 %v121
    %196 = vmatprep.subr.mxu0 0.0
    %197 = vmatpush1.msra.mxu0 %v120
    %198 = vmatprep.subr.mxu0 0.0
    %199 = vmatpush1.msra.mxu0 %v119
    %200 = vmatprep.subr.mxu0 0.0
    %201 = vmatpush1.msra.mxu0 %v118
    %202 = vmatprep.subr.mxu0 0.0
    %203 = vmatpush1.msra.mxu0 %v117
    %204 = vmatprep.subr.mxu0 0.0
    %205 = vmatpush1.msra.mxu0 %v116
    %206 = vmatprep.subr.mxu0 0.0
    %207 = vmatpush1.msra.mxu0 %v115
    %208 = vmatprep.subr.mxu0 0.0
    %209 = vmatpush1.msra.mxu0 %v114
    %210 = vmatprep.subr.mxu0 0.0
    %211 = vmatpush1.msra.mxu0 %v113
    %212 = vmatprep.subr.mxu0 0.0
    %213 = vmatpush1.msra.mxu0 %v112
    %214 = vmatprep.subr.mxu0 0.0
    %215 = vmatpush1.msra.mxu0 %v111
    %216 = vmatprep.subr.mxu0 0.0
    %217 = vmatpush1.msra.mxu0 %v110
    %218 = vmatprep.subr.mxu0 0.0
    %219 = vmatpush1.msra.mxu0 %v109
    %220 = vmatprep.subr.mxu0 0.0
    %221 = vmatpush1.msra.mxu0 %v108
    %222 = vmatprep.subr.mxu0 0.0
    %223 = vmatpush1.msra.mxu0 %v107
    %224 = vmatprep.subr.mxu0 0.0
    %225 = vmatpush1.msra.mxu0 %v106
    %226 = vmatprep.subr.mxu0 0.0
    %227 = vmatpush2.msra.mxu0 0.0
    %228 = vmatprep.subr.mxu0 0.0
    %229 = vmatpush2.msra.mxu0 0.0
    %230 = vmatprep.subr.mxu0 0.0
    %231 = vmatpush2.msra.mxu0 0.0
    %232 = vmatprep.subr.mxu0 0.0
    %233 = vmatpush2.msra.mxu0 0.0
    %234 = vmatprep.subr.mxu0 0.0
    %235 = vmatpush2.msra.mxu0 0.0
    %236 = vmatprep.subr.mxu0 0.0
    %237 = vmatpush2.msra.mxu0 0.0
    %238 = vmatprep.subr.mxu0 0.0
    %239 = vmatpush2.msra.mxu0 0.0
    %240 = vmatprep.subr.mxu0 0.0
    %241 = vmatpush2.msra.mxu0 0.0
    %242 = vmatprep.subr.mxu0 0.0
    %243 = vmatpush2.msra.mxu0 0.0
    %244 = vmatprep.subr.mxu0 0.0
    %245 = vmatpush2.msra.mxu0 0.0
    %246 = vmatprep.subr.mxu0 0.0
    %247 = vmatpush2.msra.mxu0 0.0
    %248 = vmatprep.subr.mxu0 0.0
    %249 = vmatpush2.msra.mxu0 0.0
    %250 = vmatprep.subr.mxu0 0.0
    %251 = vmatpush2.msra.mxu0 0.0
    %252 = vmatprep.subr.mxu0 0.0
    %253 = vmatpush2.msra.mxu0 0.0
    %254 = vmatprep.subr.mxu0 0.0
    %255 = vmatpush2.msra.mxu0 0.0
    %256 = vmatprep.subr.mxu0 0.0
    %257 = vmatpush2.msra.mxu0 0.0
    %258 = vmatprep.mubr.f32.mxu0 0.0
    %259 = vmatmul.mubr.f32.gmra.mxu0 %v193
    %v260 = vpop.f32.mrf.mxu0
    %v261 = vadd.f32 0.0, %v260
    %v262 = vpop.f32.mrf.mxu0
    %263 = vdwg.mxu0
    %v264 = vadd.f32 %v99, %v261
    %v265 = vtanh.pop %v264
    %266 = vmatprep.subr.mxu0 0.0
    %267 = vmatpush1.msra.mxu0 %v121
    %268 = vmatprep.subr.mxu0 0.0
    %269 = vmatpush1.msra.mxu0 %v120
    %270 = vmatprep.subr.mxu0 0.0
    %271 = vmatpush1.msra.mxu0 %v119
    %272 = vmatprep.subr.mxu0 0.0
    %273 = vmatpush1.msra.mxu0 %v118
    %274 = vmatprep.subr.mxu0 0.0
    %275 = vmatpush1.msra.mxu0 %v117
    %276 = vmatprep.subr.mxu0 0.0
    %277 = vmatpush1.msra.mxu0 %v116
    %278 = vmatprep.subr.mxu0 0.0
    %279 = vmatpush1.msra.mxu0 %v115
    %280 = vmatprep.subr.mxu0 0.0
    %281 = vmatpush1.msra.mxu0 %v114
    %282 = vmatprep.subr.mxu0 0.0
    %283 = vmatpush1.msra.mxu0 %v113
    %284 = vmatprep.subr.mxu0 0.0
    %285 = vmatpush1.msra.mxu0 %v112
    %286 = vmatprep.subr.mxu0 0.0
    %287 = vmatpush1.msra.mxu0 %v111
    %288 = vmatprep.subr.mxu0 0.0
    %289 = vmatpush1.msra.mxu0 %v110
    %290 = vmatprep.subr.mxu0 0.0
    %291 = vmatpush1.msra.mxu0 %v109
    %292 = vmatprep.subr.mxu0 0.0
    %293 = vmatpush1.msra.mxu0 %v108
    %294 = vmatprep.subr.mxu0 0.0
    %295 = vmatpush1.msra.mxu0 %v107
    %296 = vmatprep.subr.mxu0 0.0
    %297 = vmatpush1.msra.mxu0 %v106
    %298 = vmatprep.subr.mxu0 0.0
    %299 = vmatpush2.msra.mxu0 0.0
    %300 = vmatprep.subr.mxu0 0.0
    %301 = vmatpush2.msra.mxu0 0.0
    %302 = vmatprep.subr.mxu0 0.0
    %303 = vmatpush2.msra.mxu0 0.0
    %304 = vmatprep.subr.mxu0 0.0
    %305 = vmatpush2.msra.mxu0 0.0
    %306 = vmatprep.subr.mxu0 0.0
    %307 = vmatpush2.msra.mxu0 0.0
    %308 = vmatprep.subr.mxu0 0.0
    %309 = vmatpush2.msra.mxu0 0.0
    %310 = vmatprep.subr.mxu0 0.0
    %311 = vmatpush2.msra.mxu0 0.0
    %312 = vmatprep.subr.mxu0 0.0
    %313 = vmatpush2.msra.mxu0 0.0
    %314 = vmatprep.subr.mxu0 0.0
    %315 = vmatpush2.msra.mxu0 0.0
    %316 = vmatprep.subr.mxu0 0.0
    %317 = vmatpush2.msra.mxu0 0.0
    %318 = vmatprep.subr.mxu0 0.0
    %319 = vmatpush2.msra.mxu0 0.0
    %320 = vmatprep.subr.mxu0 0.0
    %321 = vmatpush2.msra.mxu0 0.0
    %322 = vmatprep.subr.mxu0 0.0
    %323 = vmatpush2.msra.mxu0 0.0
    %324 = vmatprep.subr.mxu0 0.0
    %325 = vmatpush2.msra.mxu0 0.0
    %326 = vmatprep.subr.mxu0 0.0
    %327 = vmatpush2.msra.mxu0 0.0
    %328 = vmatprep.subr.mxu0 0.0
    %329 = vmatpush2.msra.mxu0 0.0
    %330 = vmatprep.mubr.f32.mxu0 0.0
    %331 = vmatmul.mubr.f32.gmra.mxu0 %v265
    %v332 = vpop.f32.mrf.mxu0
    %v333 = vadd.f32 0.0, %v332
    %v334 = vpop.f32.mrf.mxu0
    %335 = vdwg.mxu0
    %v336 = vadd.f32 %v100, %v333
    %v337 = vtanh.pop %v336
    %338 = vmatprep.subr.mxu0 0.0
    %339 = vmatpush1.msra.mxu0 %v121
    %340 = vmatprep.subr.mxu0 0.0
    %341 = vmatpush1.msra.mxu0 %v120
    %342 = vmatprep.subr.mxu0 0.0
    %343 = vmatpush1.msra.mxu0 %v119
    %344 = vmatprep.subr.mxu0 0.0
    %345 = vmatpush1.msra.mxu0 %v118
    %346 = vmatprep.subr.mxu0 0.0
    %347 = vmatpush1.msra.mxu0 %v117
    %348 = vmatprep.subr.mxu0 0.0
    %349 = vmatpush1.msra.mxu0 %v116
    %350 = vmatprep.subr.mxu0 0.0
    %351 = vmatpush1.msra.mxu0 %v115
    %352 = vmatprep.subr.mxu0 0.0
    %353 = vmatpush1.msra.mxu0 %v114
    %354 = vmatprep.subr.mxu0 0.0
    %355 = vmatpush1.msra.mxu0 %v113
    %356 = vmatprep.subr.mxu0 0.0
    %357 = vmatpush1.msra.mxu0 %v112
    %358 = vmatprep.subr.mxu0 0.0
    %359 = vmatpush1.msra.mxu0 %v111
    %360 = vmatprep.subr.mxu0 0.0
    %361 = vmatpush1.msra.mxu0 %v110
    %362 = vmatprep.subr.mxu0 0.0
    %363 = vmatpush1.msra.mxu0 %v109
    %364 = vmatprep.subr.mxu0 0.0
    %365 = vmatpush1.msra.mxu0 %v108
    %366 = vmatprep.subr.mxu0 0.0
    %367 = vmatpush1.msra.mxu0 %v107
    %368 = vmatprep.subr.mxu0 0.0
    %369 = vmatpush1.msra.mxu0 %v106
    %370 = vmatprep.subr.mxu0 0.0
    %371 = vmatpush2.msra.mxu0 0.0
    %372 = vmatprep.subr.mxu0 0.0
    %373 = vmatpush2.msra.mxu0 0.0
    %374 = vmatprep.subr.mxu0 0.0
    %375 = vmatpush2.msra.mxu0 0.0
    %376 = vmatprep.subr.mxu0 0.0
    %377 = vmatpush2.msra.mxu0 0.0
    %378 = vmatprep.subr.mxu0 0.0
    %379 = vmatpush2.msra.mxu0 0.0
    %380 = vmatprep.subr.mxu0 0.0
    %381 = vmatpush2.msra.mxu0 0.0
    %382 = vmatprep.subr.mxu0 0.0
    %383 = vmatpush2.msra.mxu0 0.0
    %384 = vmatprep.subr.mxu0 0.0
    %385 = vmatpush2.msra.mxu0 0.0
    %386 = vmatprep.subr.mxu0 0.0
    %387 = vmatpush2.msra.mxu0 0.0
    %388 = vmatprep.subr.mxu0 0.0
    %389 = vmatpush2.msra.mxu0 0.0
    %390 = vmatprep.subr.mxu0 0.0
    %391 = vmatpush2.msra.mxu0 0.0
    %392 = vmatprep.subr.mxu0 0.0
    %393 = vmatpush2.msra.mxu0 0.0
    %394 = vmatprep.subr.mxu0 0.0
    %395 = vmatpush2.msra.mxu0 0.0
    %396 = vmatprep.subr.mxu0 0.0
    %397 = vmatpush2.msra.mxu0 0.0
    %398 = vmatprep.subr.mxu0 0.0
    %399 = vmatpush2.msra.mxu0 0.0
    %400 = vmatprep.subr.mxu0 0.0
    %401 = vmatpush2.msra.mxu0 0.0
    %402 = vmatprep.mubr.f32.mxu0 0.0
    %403 = vmatmul.mubr.f32.gmra.mxu0 %v337
    %v404 = vpop.f32.mrf.mxu0
    %v405 = vadd.f32 0.0, %v404
    %v406 = vpop.f32.mrf.mxu0
    %407 = vdwg.mxu0
    %v408 = vadd.f32 %v101, %v405
    %v409 = vtanh.pop %v408
    %410 = vmatprep.subr.mxu0 0.0
    %411 = vmatpush1.msra.mxu0 %v121
    %412 = vmatprep.subr.mxu0 0.0
    %413 = vmatpush1.msra.mxu0 %v120
    %414 = vmatprep.subr.mxu0 0.0
    %415 = vmatpush1.msra.mxu0 %v119
    %416 = vmatprep.subr.mxu0 0.0
    %417 = vmatpush1.msra.mxu0 %v118
    %418 = vmatprep.subr.mxu0 0.0
    %419 = vmatpush1.msra.mxu0 %v117
    %420 = vmatprep.subr.mxu0 0.0
    %421 = vmatpush1.msra.mxu0 %v116
    %422 = vmatprep.subr.mxu0 0.0
    %423 = vmatpush1.msra.mxu0 %v115
    %424 = vmatprep.subr.mxu0 0.0
    %425 = vmatpush1.msra.mxu0 %v114
    %426 = vmatprep.subr.mxu0 0.0
    %427 = vmatpush1.msra.mxu0 %v113
    %428 = vmatprep.subr.mxu0 0.0
    %429 = vmatpush1.msra.mxu0 %v112
    %430 = vmatprep.subr.mxu0 0.0
    %431 = vmatpush1.msra.mxu0 %v111
    %432 = vmatprep.subr.mxu0 0.0
    %433 = vmatpush1.msra.mxu0 %v110
    %434 = vmatprep.subr.mxu0 0.0
    %435 = vmatpush1.msra.mxu0 %v109
    %436 = vmatprep.subr.mxu0 0.0
    %437 = vmatpush1.msra.mxu0 %v108
    %438 = vmatprep.subr.mxu0 0.0
    %439 = vmatpush1.msra.mxu0 %v107
    %440 = vmatprep.subr.mxu0 0.0
    %441 = vmatpush1.msra.mxu0 %v106
    %442 = vmatprep.subr.mxu0 0.0
    %443 = vmatpush2.msra.mxu0 0.0
    %444 = vmatprep.subr.mxu0 0.0
    %445 = vmatpush2.msra.mxu0 0.0
    %446 = vmatprep.subr.mxu0 0.0
    %447 = vmatpush2.msra.mxu0 0.0
    %448 = vmatprep.subr.mxu0 0.0
    %449 = vmatpush2.msra.mxu0 0.0
    %450 = vmatprep.subr.mxu0 0.0
    %451 = vmatpush2.msra.mxu0 0.0
    %452 = vmatprep.subr.mxu0 0.0
    %453 = vmatpush2.msra.mxu0 0.0
    %454 = vmatprep.subr.mxu0 0.0
    %455 = vmatpush2.msra.mxu0 0.0
    %456 = vmatprep.subr.mxu0 0.0
    %457 = vmatpush2.msra.mxu0 0.0
    %458 = vmatprep.subr.mxu0 0.0
    %459 = vmatpush2.msra.mxu0 0.0
    %460 = vmatprep.subr.mxu0 0.0
    %461 = vmatpush2.msra.mxu0 0.0
    %462 = vmatprep.subr.mxu0 0.0
    %463 = vmatpush2.msra.mxu0 0.0
    %464 = vmatprep.subr.mxu0 0.0
    %465 = vmatpush2.msra.mxu0 0.0
    %466 = vmatprep.subr.mxu0 0.0
    %467 = vmatpush2.msra.mxu0 0.0
    %468 = vmatprep.subr.mxu0 0.0
    %469 = vmatpush2.msra.mxu0 0.0
    %470 = vmatprep.subr.mxu0 0.0
    %471 = vmatpush2.msra.mxu0 0.0
    %472 = vmatprep.subr.mxu0 0.0
    %473 = vmatpush2.msra.mxu0 0.0
    %474 = vmatprep.mubr.f32.mxu0 0.0
    %475 = vmatmul.mubr.f32.gmra.mxu0 %v409
    %v476 = vpop.f32.mrf.mxu0
    %v477 = vadd.f32 0.0, %v476
    %v478 = vpop.f32.mrf.mxu0
    %479 = vdwg.mxu0
    %v480 = vadd.f32 %v102, %v477
    %v481 = vtanh.pop %v480
    %482 = vmatprep.subr.mxu0 0.0
    %483 = vmatpush1.msra.mxu0 %v121
    %484 = vmatprep.subr.mxu0 0.0
    %485 = vmatpush1.msra.mxu0 %v120
    %486 = vmatprep.subr.mxu0 0.0
    %487 = vmatpush1.msra.mxu0 %v119
    %488 = vmatprep.subr.mxu0 0.0
    %489 = vmatpush1.msra.mxu0 %v118
    %490 = vmatprep.subr.mxu0 0.0
    %491 = vmatpush1.msra.mxu0 %v117
    %492 = vmatprep.subr.mxu0 0.0
    %493 = vmatpush1.msra.mxu0 %v116
    %494 = vmatprep.subr.mxu0 0.0
    %495 = vmatpush1.msra.mxu0 %v115
    %496 = vmatprep.subr.mxu0 0.0
    %497 = vmatpush1.msra.mxu0 %v114
    %498 = vmatprep.subr.mxu0 0.0
    %499 = vmatpush1.msra.mxu0 %v113
    %500 = vmatprep.subr.mxu0 0.0
    %501 = vmatpush1.msra.mxu0 %v112
    %502 = vmatprep.subr.mxu0 0.0
    %503 = vmatpush1.msra.mxu0 %v111
    %504 = vmatprep.subr.mxu0 0.0
    %505 = vmatpush1.msra.mxu0 %v110
    %506 = vmatprep.subr.mxu0 0.0
    %507 = vmatpush1.msra.mxu0 %v109
    %508 = vmatprep.subr.mxu0 0.0
    %509 = vmatpush1.msra.mxu0 %v108
    %510 = vmatprep.subr.mxu0 0.0
    %511 = vmatpush1.msra.mxu0 %v107
    %512 = vmatprep.subr.mxu0 0.0
    %513 = vmatpush1.msra.mxu0 %v106
    %514 = vmatprep.subr.mxu0 0.0
    %515 = vmatpush2.msra.mxu0 0.0
    %516 = vmatprep.subr.mxu0 0.0
    %517 = vmatpush2.msra.mxu0 0.0
    %518 = vmatprep.subr.mxu0 0.0
    %519 = vmatpush2.msra.mxu0 0.0
    %520 = vmatprep.subr.mxu0 0.0
    %521 = vmatpush2.msra.mxu0 0.0
    %522 = vmatprep.subr.mxu0 0.0
    %523 = vmatpush2.msra.mxu0 0.0
    %524 = vmatprep.subr.mxu0 0.0
    %525 = vmatpush2.msra.mxu0 0.0
    %526 = vmatprep.subr.mxu0 0.0
    %527 = vmatpush2.msra.mxu0 0.0
    %528 = vmatprep.subr.mxu0 0.0
    %529 = vmatpush2.msra.mxu0 0.0
    %530 = vmatprep.subr.mxu0 0.0
    %531 = vmatpush2.msra.mxu0 0.0
    %532 = vmatprep.subr.mxu0 0.0
    %533 = vmatpush2.msra.mxu0 0.0
    %534 = vmatprep.subr.mxu0 0.0
    %535 = vmatpush2.msra.mxu0 0.0
    %536 = vmatprep.subr.mxu0 0.0
    %537 = vmatpush2.msra.mxu0 0.0
    %538 = vmatprep.subr.mxu0 0.0
    %539 = vmatpush2.msra.mxu0 0.0
    %540 = vmatprep.subr.mxu0 0.0
    %541 = vmatpush2.msra.mxu0 0.0
    %542 = vmatprep.subr.mxu0 0.0
    %543 = vmatpush2.msra.mxu0 0.0
    %544 = vmatprep.subr.mxu0 0.0
    %545 = vmatpush2.msra.mxu0 0.0
    %546 = vmatprep.mubr.f32.mxu0 0.0
    %547 = vmatmul.mubr.f32.gmra.mxu0 %v481
    %v548 = vpop.f32.mrf.mxu0
    %v549 = vadd.f32 0.0, %v548
    %v550 = vpop.f32.mrf.mxu0
    %551 = vdwg.mxu0
    %v552 = vadd.f32 %v103, %v549
    %v553 = vtanh.pop %v552
    %554 = vmatprep.subr.mxu0 0.0
    %555 = vmatpush1.msra.mxu0 %v121
    %556 = vmatprep.subr.mxu0 0.0
    %557 = vmatpush1.msra.mxu0 %v120
    %558 = vmatprep.subr.mxu0 0.0
    %559 = vmatpush1.msra.mxu0 %v119
    %560 = vmatprep.subr.mxu0 0.0
    %561 = vmatpush1.msra.mxu0 %v118
    %562 = vmatprep.subr.mxu0 0.0
    %563 = vmatpush1.msra.mxu0 %v117
    %564 = vmatprep.subr.mxu0 0.0
    %565 = vmatpush1.msra.mxu0 %v116
    %566 = vmatprep.subr.mxu0 0.0
    %567 = vmatpush1.msra.mxu0 %v115
    %568 = vmatprep.subr.mxu0 0.0
    %569 = vmatpush1.msra.mxu0 %v114
    %570 = vmatprep.subr.mxu0 0.0
    %571 = vmatpush1.msra.mxu0 %v113
    %572 = vmatprep.subr.mxu0 0.0
    %573 = vmatpush1.msra.mxu0 %v112
    %574 = vmatprep.subr.mxu0 0.0
    %575 = vmatpush1.msra.mxu0 %v111
    %576 = vmatprep.subr.mxu0 0.0
    %577 = vmatpush1.msra.mxu0 %v110
    %578 = vmatprep.subr.mxu0 0.0
    %579 = vmatpush1.msra.mxu0 %v109
    %580 = vmatprep.subr.mxu0 0.0
    %581 = vmatpush1.msra.mxu0 %v108
    %582 = vmatprep.subr.mxu0 0.0
    %583 = vmatpush1.msra.mxu0 %v107
    %584 = vmatprep.subr.mxu0 0.0
    %585 = vmatpush1.msra.mxu0 %v106
    %586 = vmatprep.subr.mxu0 0.0
    %587 = vmatpush2.msra.mxu0 0.0
    %588 = vmatprep.subr.mxu0 0.0
    %589 = vmatpush2.msra.mxu0 0.0
    %590 = vmatprep.subr.mxu0 0.0
    %591 = vmatpush2.msra.mxu0 0.0
    %592 = vmatprep.subr.mxu0 0.0
    %593 = vmatpush2.msra.mxu0 0.0
    %594 = vmatprep.subr.mxu0 0.0
    %595 = vmatpush2.msra.mxu0 0.0
    %596 = vmatprep.subr.mxu0 0.0
    %597 = vmatpush2.msra.mxu0 0.0
    %598 = vmatprep.subr.mxu0 0.0
    %599 = vmatpush2.msra.mxu0 0.0
    %600 = vmatprep.subr.mxu0 0.0
    %601 = vmatpush2.msra.mxu0 0.0
    %602 = vmatprep.subr.mxu0 0.0
    %603 = vmatpush2.msra.mxu0 0.0
    %604 = vmatprep.subr.mxu0 0.0
    %605 = vmatpush2.msra.mxu0 0.0
    %606 = vmatprep.subr.mxu0 0.0
    %607 = vmatpush2.msra.mxu0 0.0
    %608 = vmatprep.subr.mxu0 0.0
    %609 = vmatpush2.msra.mxu0 0.0
    %610 = vmatprep.subr.mxu0 0.0
    %611 = vmatpush2.msra.mxu0 0.0
    %612 = vmatprep.subr.mxu0 0.0
    %613 = vmatpush2.msra.mxu0 0.0
    %614 = vmatprep.subr.mxu0 0.0
    %615 = vmatpush2.msra.mxu0 0.0
    %616 = vmatprep.subr.mxu0 0.0
    %617 = vmatpush2.msra.mxu0 0.0
    %618 = vmatprep.mubr.f32.mxu0 0.0
    %619 = vmatmul.mubr.f32.gmra.mxu0 %v553
    %v620 = vpop.f32.mrf.mxu0
    %v621 = vadd.f32 0.0, %v620
    %v622 = vpop.f32.mrf.mxu0
    %623 = vdwg.mxu0
    %v624 = vadd.f32 %v104, %v621
    %v625 = vtanh.pop %v624
    %626 = vmatprep.subr.mxu0 0.0
    %627 = vmatpush1.msra.mxu0 %v121
    %628 = vmatprep.subr.mxu0 0.0
    %629 = vmatpush1.msra.mxu0 %v120
    %630 = vmatprep.subr.mxu0 0.0
    %631 = vmatpush1.msra.mxu0 %v119
    %632 = vmatprep.subr.mxu0 0.0
    %633 = vmatpush1.msra.mxu0 %v118
    %634 = vmatprep.subr.mxu0 0.0
    %635 = vmatpush1.msra.mxu0 %v117
    %636 = vmatprep.subr.mxu0 0.0
    %637 = vmatpush1.msra.mxu0 %v116
    %638 = vmatprep.subr.mxu0 0.0
    %639 = vmatpush1.msra.mxu0 %v115
    %640 = vmatprep.subr.mxu0 0.0
    %641 = vmatpush1.msra.mxu0 %v114
    %642 = vmatprep.subr.mxu0 0.0
    %643 = vmatpush1.msra.mxu0 %v113
    %644 = vmatprep.subr.mxu0 0.0
    %645 = vmatpush1.msra.mxu0 %v112
    %646 = vmatprep.subr.mxu0 0.0
    %647 = vmatpush1.msra.mxu0 %v111
    %648 = vmatprep.subr.mxu0 0.0
    %649 = vmatpush1.msra.mxu0 %v110
    %650 = vmatprep.subr.mxu0 0.0
    %651 = vmatpush1.msra.mxu0 %v109
    %652 = vmatprep.subr.mxu0 0.0
    %653 = vmatpush1.msra.mxu0 %v108
    %654 = vmatprep.subr.mxu0 0.0
    %655 = vmatpush1.msra.mxu0 %v107
    %656 = vmatprep.subr.mxu0 0.0
    %657 = vmatpush1.msra.mxu0 %v106
    %658 = vmatprep.subr.mxu0 0.0
    %659 = vmatpush2.msra.mxu0 0.0
    %660 = vmatprep.subr.mxu0 0.0
    %661 = vmatpush2.msra.mxu0 0.0
    %662 = vmatprep.subr.mxu0 0.0
    %663 = vmatpush2.msra.mxu0 0.0
    %664 = vmatprep.subr.mxu0 0.0
    %665 = vmatpush2.msra.mxu0 0.0
    %666 = vmatprep.subr.mxu0 0.0
    %667 = vmatpush2.msra.mxu0 0.0
    %668 = vmatprep.subr.mxu0 0.0
    %669 = vmatpush2.msra.mxu0 0.0
    %670 = vmatprep.subr.mxu0 0.0
    %671 = vmatpush2.msra.mxu0 0.0
    %672 = vmatprep.subr.mxu0 0.0
    %673 = vmatpush2.msra.mxu0 0.0
    %674 = vmatprep.subr.mxu0 0.0
    %675 = vmatpush2.msra.mxu0 0.0
    %676 = vmatprep.subr.mxu0 0.0
    %677 = vmatpush2.msra.mxu0 0.0
    %678 = vmatprep.subr.mxu0 0.0
    %679 = vmatpush2.msra.mxu0 0.0
    %680 = vmatprep.subr.mxu0 0.0
    %681 = vmatpush2.msra.mxu0 0.0
    %682 = vmatprep.subr.mxu0 0.0
    %683 = vmatpush2.msra.mxu0 0.0
    %684 = vmatprep.subr.mxu0 0.0
    %685 = vmatpush2.msra.mxu0 0.0
    %686 = vmatprep.subr.mxu0 0.0
    %687 = vmatpush2.msra.mxu0 0.0
    %688 = vmatprep.subr.mxu0 0.0
    %689 = vmatpush2.msra.mxu0 0.0
    %690 = vmatprep.mubr.f32.mxu0 0.0
    %691 = vmatmul.mubr.f32.gmra.mxu0 %v625
    %v692 = vpop.f32.mrf.mxu0
    %v693 = vadd.f32 0.0, %v692
    %v694 = vpop.f32.mrf.mxu0
    %695 = vdwg.mxu0
    %v696 = vadd.f32 %v105, %v693
    %v697 = vtanh.pop %v696
    %v698 = vld [vmem:[%s3] sm:$0x1]
    %v699 = vlaneseq
    %v700 = vshrl.u32 %v699, 7
    %v701 = vsub.s32 0, %v700
    %v702 = vrot.slane %v698, %v701
    %v703 = vmul.f32 %v697, %v702
    %704 = vadd.xlane.f32.xlu0 %v703
    %v705 = vpop.xlane.xlu0 %704
    %v706 = vld [vmem:[%s3 + $0x1] sm:$0x1]
    %v707 = vlaneseq
    %v708 = vshrl.u32 %v707, 7
    %v709 = vsub.s32 0, %v708
    %v710 = vrot.slane %v706, %v709
    %v711 = vadd.f32 %v705, %v710
    %713 = vset.pattern.permute.xlu0 0
    %714 = vperm.xlu0 %713, %v711
    %v715 = vpop.permute.xlu0 %714
    %717 = vst [vmem:[#allocation5] sm:$0xff] %v715
    // Predicated region
    $region22: #{tpu_custom_call.1} parent=1 // pred_check
      _
    $region23: #{tpu_custom_call.1} parent=1 // pred_check_branch
      %719 = sbr.rel (0) target = $region25
    $region24: #{tpu_custom_call.1} parent=1 // pred_region
      %s721 = ssub.s32 128, 128
      %722 = vsyncadd [#allocation4], %s721
      %s724 = sshll.u32 [#allocation5], 4
      %s725 = int_to_ptr.vmem [resolvable:$true] %s724
      %727 = dma.vmem_to_hbm [thread:$0]  %s725, 128, %s4, [#allocation4]
    $region25: #{tpu_custom_call.1} parent=1 // pred_fallthru
      _
    // Predicated region
    $region26: #{tpu_custom_call.1} parent=1 // pred_check
      _
    $region27: #{tpu_custom_call.1} parent=1 // pred_check_branch
      %729 = sbr.rel (0) target = $region29
    $region28: #{tpu_custom_call.1} parent=1 // pred_region
      %730 = dma.done [#allocation4], 128
    $region29: #{tpu_custom_call.1} parent=1 // pred_fallthru
      _
    %731 = vsyncpa [#allocation3], 1
    %732 = vsyncpa [#allocation4], 1

</llo_original>
